<compile_context>
chip_gen: v7x
topology: tpu7x:2x2x1
jax: 0.10.0
libtpu: 0.0.40
codegen_flags: <defaults>
</compile_context>

<pallas_src>
import functools

import jax
import jax.numpy as jnp
from jax import lax
from jax.experimental import pallas as pl
from jax.experimental.pallas import tpu as pltpu


_LANE = 128
_SUBLANE = 8
# Per-block budget.  With double-buffered input + output blocks this is
# ~4 * 3 MiB = 12 MiB live, under v5e's 16 MiB default scoped-VMEM limit and
# well under v6e/v7x's 32 MiB default.
_TILE_BUDGET_BYTES = 3 << 20
# Explicit scoped-VMEM limit: 32 MiB is safe on v5e/v6e (128 MiB physical) and
# equals the default on v6e/v7x (v7x: 64 MiB physical).
_VMEM_LIMIT_BYTES = 32 << 20


# --------------------------------------------------------------------------
# Kernels
# --------------------------------------------------------------------------

def _csa_fused_kernel(eps, inv_nm1, x_ref, ms_ref, o_ref):
    """Single-pass instance norm over the lane (spatial) axis + fused affine.

    x_ref:  [rt, HW]  float (any width; math in f32)
    ms_ref: [rt, 2]   f32   col 0 = new_mean, col 1 = new_std (precomputed)
    o_ref:  [rt, HW]  same dtype as x
    """
    x = x_ref[...].astype(jnp.float32)                       # [rt, HW]
    hw = x.shape[-1]

    mu = jnp.sum(x, axis=-1, keepdims=True) * (1.0 / hw)     # [rt, 1]
    diff = x - mu
    # Unbiased variance (ddof=1) -- matches torch.var() default in the module.
    var = jnp.sum(diff * diff, axis=-1, keepdims=True) * inv_nm1

    new_mean = ms_ref[:, 0:1]
    new_std = ms_ref[:, 1:2]
    # rsqrt rides the EUP slot; fold new_std into the same per-row scale so
    # the full-width path is a single multiply + add.
    scale = lax.rsqrt(var + eps) * new_std                   # [rt, 1]
    o_ref[...] = (diff * scale + new_mean).astype(o_ref.dtype)


def _csa_stats_kernel(x_ref, stat_ref):
    """Two-pass path, pass 1: accumulate per-row sum and sum-of-squares.

    Grid = (row_tiles, hw_tiles); hw axis is the (last, "arbitrary") reduction
    axis and the output block is resident across it (P3 accumulator pattern).

    x_ref:    [rt, hw_t]
    stat_ref: [rt, 2] f32  -- col 0 = sum, col 1 = sum of squares
    """
    h = pl.program_id(1)

    @pl.when(h == 0)
    def _():
        stat_ref[...] = jnp.zeros_like(stat_ref)

    x = x_ref[...].astype(jnp.float32)
    s = jnp.sum(x, axis=-1, keepdims=True)
    sq = jnp.sum(x * x, axis=-1, keepdims=True)
    stat_ref[...] += jnp.concatenate([s, sq], axis=-1)


def _csa_affine_kernel(x_ref, p_ref, o_ref):
    """Two-pass path, pass 2: out = x * scale + shift (per-row scale/shift).

    x_ref: [rt, hw_t]   p_ref: [rt, 2] f32 (scale, shift)   o_ref: [rt, hw_t]
    """
    x = x_ref[...].astype(jnp.float32)
    p = p_ref[...]
    o_ref[...] = (x * p[:, 0:1] + p[:, 1:2]).astype(o_ref.dtype)


# --------------------------------------------------------------------------
# Tile selection
# --------------------------------------------------------------------------

def _round_down_mult(x, m):
    return max(m, (x // m) * m)


def _pick_row_tile(rows, hw, dtype_bytes):
    """Row tile: multiple of 8, inside the VMEM block budget, and small enough
    that the grid has >=2 (ideally >=4) steps so v7x can shard the parallel
    row axis across its 2 TensorCores and the DMA pipeline overlaps."""
    cap = max(_SUBLANE, _TILE_BUDGET_BYTES // max(hw * dtype_bytes, 1))
    cap = _round_down_mult(cap, _SUBLANE)
    rt = min(rows, cap)
    if rows >= 4 * _SUBLANE:
        rt = min(rt, _round_down_mult(rows // 4, _SUBLANE))
    elif rows >= 2 * _SUBLANE:
        rt = min(rt, _round_down_mult(rows // 2, _SUBLANE))
    return max(rt, _SUBLANE)


def _pick_hw_tile(hw, dtype_bytes, max_tile=None):
    """Lane tile: largest multiple of 128 dividing HW that fits the budget
    with the minimal 8-row block.  Returns None if no such tile exists."""
    cap = max(_LANE, _TILE_BUDGET_BYTES // max(_SUBLANE * dtype_bytes, 1))
    if max_tile is not None:
        cap = min(cap, max_tile)
    best = None
    t = _LANE
    while t <= min(hw, cap):
        if hw % t == 0:
            best = t
        t += _LANE
    return best


def _pad_rows(a, rows_pad):
    rows = a.shape[0]
    if rows_pad == rows:
        return a
    pad = [(0, rows_pad - rows)] + [(0, 0)] * (a.ndim - 1)
    return jnp.pad(a, pad)


# --------------------------------------------------------------------------
# Wrapper
# --------------------------------------------------------------------------

def csa_forward(x, label, combine_weights,
                proto_mean_pos, proto_std_pos,
                proto_mean_neg, proto_std_neg,
                eps=1e-5, force_two_pass=False, hw_tile=None):
    """CSA forward.

    x: [B, C, H, W] float (f32 or bf16), label: [B] int32,
    combine_weights: [B, K] f32, protos: [K, C] f32.  Returns [B, C, H, W]
    in x.dtype.  Internal math is always f32.
    """
    B, C, H, W = x.shape
    K = proto_mean_pos.shape[0]
    assert proto_mean_pos.shape[1] == C, "style_dim must equal channel count"
    HW = H * W
    rows = B * C
    out_dtype = x.dtype
    dbytes = jnp.dtype(out_dtype).itemsize
    nm1 = max(HW - 1, 1)                       # guard HW == 1 (ddof=1)

    # --- hoisted tiny style mixing + label selection (2*B*K*C FLOPs) -------
    sel = (label == 0)[:, None, None]                                  # [B,1,1]
    pm = jnp.where(sel, proto_mean_pos[None], proto_mean_neg[None])    # [B,K,C]
    ps = jnp.where(sel, proto_std_pos[None], proto_std_neg[None])
    new_mean = jnp.einsum('bk,bkc->bc', combine_weights.astype(jnp.float32),
                          pm.astype(jnp.float32)).reshape(rows)
    new_std = jnp.einsum('bk,bkc->bc', combine_weights.astype(jnp.float32),
                         ps.astype(jnp.float32)).reshape(rows)

    # --- flatten (batch, channel) onto the sublane axis, HW onto lanes -----
    # TODO(synk): if HW is not a multiple of 128, stores are lane-masked
    # (vst.msk); pack multiple spatial rows per lane row for production shapes
    # like 14x14 / 7x7.
    x2 = x.reshape(rows, HW)

    rows_r8 = ((rows + _SUBLANE - 1) // _SUBLANE) * _SUBLANE
    needs_hw_tiling = (_SUBLANE * HW * dbytes > _TILE_BUDGET_BYTES) or force_two_pass
    hw_t = _pick_hw_tile(HW, dbytes, max_tile=hw_tile) if needs_hw_tiling else None
    use_two_pass = needs_hw_tiling and (hw_t is not None)
    # TODO(synk): if HW is huge but has no multiple-of-128 divisor in budget,
    # we fall back to the fused path (full-HW block) and rely on the explicit
    # vmem limit; a masked ragged-HW tiling would remove this corner case.

    if not use_two_pass:
        # ---------------- Path A: single fused kernel ----------------------
        rt = _pick_row_tile(rows_r8, HW, dbytes)
        n_row = pl.cdiv(rows_r8, rt)
        rows_pad = n_row * rt

        x2p = _pad_rows(x2, rows_pad)
        ms = jnp.stack([new_mean, new_std], axis=-1).astype(jnp.float32)  # [rows,2]
        msp = _pad_rows(ms, rows_pad)

        kernel = functools.partial(_csa_fused_kernel, float(eps), 1.0 / nm1)
        cost = pl.CostEstimate(flops=6 * rows * HW,
                               transcendentals=rows,
                               bytes_accessed=2 * rows * HW * dbytes + 8 * rows)
        out = pl.pallas_call(
            kernel,
            out_shape=jax.ShapeDtypeStruct((rows_pad, HW), out_dtype),
            grid_spec=pltpu.PrefetchScalarGridSpec(
                num_scalar_prefetch=0,
                grid=(n_row,),
                in_specs=[pl.BlockSpec((rt, HW), lambda r: (r, 0)),
                          pl.BlockSpec((rt, 2), lambda r: (r, 0))],
                out_specs=pl.BlockSpec((rt, HW), lambda r: (r, 0)),
            ),
            compiler_params=pltpu.CompilerParams(
                dimension_semantics=("parallel",),
                vmem_limit_bytes=_VMEM_LIMIT_BYTES),
            cost_estimate=cost,
        )(x2p, msp)
        return out[:rows].reshape(B, C, H, W)

    # ---------------- Path B: HW-tiled two-pass (large spatial) ------------
    rt = _pick_row_tile(rows_r8, hw_t, dbytes)
    n_row = pl.cdiv(rows_r8, rt)
    rows_pad = n_row * rt
    n_hw = HW // hw_t

    x2p = _pad_rows(x2, rows_pad)

    # Pass 1: per-row sum / sum-of-squares, reduction axis ("arbitrary") last.
    stats_cost = pl.CostEstimate(flops=3 * rows * HW,
                                 transcendentals=0,
                                 bytes_accessed=rows * HW * dbytes + 8 * rows)
    stats = pl.pallas_call(
        _csa_stats_kernel,
        out_shape=jax.ShapeDtypeStruct((rows_pad, 2), jnp.float32),
        grid_spec=pltpu.PrefetchScalarGridSpec(
            num_scalar_prefetch=0,
            grid=(n_row, n_hw),
            in_specs=[pl.BlockSpec((rt, hw_t), lambda r, h: (r, h))],
            out_specs=pl.BlockSpec((rt, 2), lambda r, h: (r, 0)),
        ),
        compiler_params=pltpu.CompilerParams(
            dimension_semantics=("parallel", "arbitrary"),
            vmem_limit_bytes=_VMEM_LIMIT_BYTES),
        cost_estimate=stats_cost,
    )(x2p)

    # Tiny per-row math in the wrapper (O(rows) FLOPs).
    s = stats[:rows, 0]
    sq = stats[:rows, 1]
    mu = s * (1.0 / HW)
    var = (sq - HW * mu * mu) * (1.0 / nm1)
    scale = lax.rsqrt(var + eps) * new_std
    shift = new_mean - mu * scale
    p = jnp.stack([scale, shift], axis=-1).astype(jnp.float32)          # [rows,2]
    pp = _pad_rows(p, rows_pad)

    # Pass 2: fused per-row affine, fully parallel grid.
    affine_cost = pl.CostEstimate(flops=2 * rows * HW,
                                  transcendentals=0,
                                  bytes_accessed=2 * rows * HW * dbytes + 8 * rows)
    out = pl.pallas_call(
        _csa_affine_kernel,
        out_shape=jax.ShapeDtypeStruct((rows_pad, HW), out_dtype),
        grid_spec=pltpu.PrefetchScalarGridSpec(
            num_scalar_prefetch=0,
            grid=(n_row, n_hw),
            in_specs=[pl.BlockSpec((rt, hw_t), lambda r, h: (r, h)),
                      pl.BlockSpec((rt, 2), lambda r, h: (r, 0))],
            out_specs=pl.BlockSpec((rt, hw_t), lambda r, h: (r, h)),
        ),
        compiler_params=pltpu.CompilerParams(
            dimension_semantics=("parallel", "parallel"),
            vmem_limit_bytes=_VMEM_LIMIT_BYTES),
        cost_estimate=affine_cost,
    )(x2p, pp)
    return out[:rows].reshape(B, C, H, W)


# --------------------------------------------------------------------------
# Pure-JAX reference (mirrors the PyTorch CSA.forward)
# --------------------------------------------------------------------------

def csa_reference(x, label, w, pmp, psp, pmn, psn, eps=1e-5):
    xf = x.astype(jnp.float32)
    mean = jnp.mean(xf, axis=(2, 3), keepdims=True)
    var = jnp.var(xf, axis=(2, 3), keepdims=True, ddof=1)   # torch.var default
    x_norm = (xf - mean) / jnp.sqrt(var + eps)
    sel = (label == 0)[:, None, None]
    pm = jnp.where(sel, pmp[None], pmn[None])                # [B, K, C]
    ps = jnp.where(sel, psp[None], psn[None])
    new_mean = jnp.einsum('bk,bkc->bc', w, pm)
    new_std = jnp.einsum('bk,bkc->bc', w, ps)
    return x_norm * new_std[:, :, None, None] + new_mean[:, :, None, None]


if __name__ == "__main__":
    B, C, H, W = 2, 4, 16, 16        # style_dim == C
    K = 8                            # base_style_num
    concentration_coeff = 1.0
    eps = 1e-5

    key = jax.random.PRNGKey(0)
    kx, kw, k1, k2, k3, k4 = jax.random.split(key, 6)

    x = jax.random.normal(kx, (B, C, H, W), dtype=jnp.float32)
    label = jnp.array([0, 1], dtype=jnp.int32)

    # Dirichlet sample (torch.distributions.Dirichlet equivalent).
    combine_weights = jax.random.dirichlet(
        kw, jnp.full((K,), concentration_coeff, dtype=jnp.float32),
        shape=(B,)).astype(jnp.float32)

    # The module registers these buffers as zeros; initialize with non-trivial
    # deterministic values so the full data path is exercised.
    proto_mean_pos = jax.random.normal(k1, (K, C), dtype=jnp.float32)
    proto_std_pos = jax.random.uniform(k2, (K, C), dtype=jnp.float32) + 0.5
    proto_mean_neg = jax.random.normal(k3, (K, C), dtype=jnp.float32)
    proto_std_neg = jax.random.uniform(k4, (K, C), dtype=jnp.float32) + 0.5

    ref = csa_reference(x, label, combine_weights,
                        proto_mean_pos, proto_std_pos,
                        proto_mean_neg, proto_std_neg, eps=eps)

    # --- Path A: single fused kernel (typical shapes) ----------------------
    out_a = csa_forward(x, label, combine_weights,
                        proto_mean_pos, proto_std_pos,
                        proto_mean_neg, proto_std_neg, eps=eps)
    out_a = jax.block_until_ready(out_a)
    assert out_a.shape == (B, C, H, W)
    assert jnp.allclose(out_a, ref, atol=1e-4, rtol=1e-4), "fused path mismatch"

    # --- Path B: HW-tiled two-pass path (large-spatial code path) ----------
    out_b = csa_forward(x, label, combine_weights,
                        proto_mean_pos, proto_std_pos,
                        proto_mean_neg, proto_std_neg, eps=eps,
                        force_two_pass=True, hw_tile=128)
    out_b = jax.block_until_ready(out_b)
    assert jnp.allclose(out_b, ref, atol=1e-4, rtol=1e-4), "two-pass path mismatch"

    # --- bf16 HBM I/O with f32 internal math --------------------------------
    out_bf16 = csa_forward(x.astype(jnp.bfloat16), label, combine_weights,
                           proto_mean_pos, proto_std_pos,
                           proto_mean_neg, proto_std_neg, eps=eps)
    out_bf16 = jax.block_until_ready(out_bf16)
    assert out_bf16.dtype == jnp.bfloat16
    assert jnp.allclose(out_bf16.astype(jnp.float32), ref, atol=7e-2, rtol=7e-2), \
        "bf16 path mismatch"

    print("KERNEL_OK")
</pallas_src>

<mosaic_0001>
module attributes {stable_mosaic.version = 11 : i64} {
  func.func @_csa_fused_kernel(%arg0: i32, %arg1: memref<8x256xf32, #tpu.memory_space<vmem>>, %arg2: memref<8x2xf32, #tpu.memory_space<vmem>>, %arg3: memref<8x256xf32, #tpu.memory_space<vmem>>) attributes {dimension_semantics = [#tpu.dimension_semantics<parallel>], iteration_bounds = array<i64: 1>, scalar_prefetch = 0 : i64, scratch_operands = 0 : i64, tpu.core_type = #tpu.core_type<tc>, window_params = [{transform_indices = @transform_0, window_bounds = array<i64: 8, 256>}, {transform_indices = @transform_1, window_bounds = array<i64: 8, 2>}, {transform_indices = @transform_2, window_bounds = array<i64: 8, 256>}]} {
    %c0 = arith.constant 0 : index
    %c0_0 = arith.constant 0 : index
    %0 = vector.load %arg1[%c0, %c0_0] : memref<8x256xf32, #tpu.memory_space<vmem>>, vector<8x256xf32>
    %cst = arith.constant dense<0.000000e+00> : vector<8xf32>
    %1 = vector.multi_reduction <add>, %0, %cst [1] : vector<8x256xf32> to vector<8xf32>
    %2 = vector.shape_cast %1 : vector<8xf32> to vector<8x1xf32>
    %cst_1 = arith.constant 3.906250e-03 : f32
    %3 = vector.broadcast %cst_1 : f32 to vector<8x1xf32>
    %4 = arith.mulf %2, %3 : vector<8x1xf32>
    %5 = vector.broadcast %4 : vector<8x1xf32> to vector<8x256xf32>
    %6 = arith.subf %0, %5 : vector<8x256xf32>
    %7 = arith.mulf %6, %6 : vector<8x256xf32>
    %cst_2 = arith.constant dense<0.000000e+00> : vector<8xf32>
    %8 = vector.multi_reduction <add>, %7, %cst_2 [1] : vector<8x256xf32> to vector<8xf32>
    %9 = vector.shape_cast %8 : vector<8xf32> to vector<8x1xf32>
    %cst_3 = arith.constant 0.00392156886 : f32
    %10 = vector.broadcast %cst_3 : f32 to vector<8x1xf32>
    %11 = arith.mulf %9, %10 : vector<8x1xf32>
    %c0_4 = arith.constant 0 : index
    %c0_5 = arith.constant 0 : index
    %12 = vector.load %arg2[%c0_4, %c0_5] : memref<8x2xf32, #tpu.memory_space<vmem>>, vector<8x1xf32>
    %c0_6 = arith.constant 0 : index
    %c1 = arith.constant 1 : index
    %13 = vector.load %arg2[%c0_6, %c1] : memref<8x2xf32, #tpu.memory_space<vmem>>, vector<8x1xf32>
    %cst_7 = arith.constant 9.99999974E-6 : f32
    %14 = vector.broadcast %cst_7 : f32 to vector<8x1xf32>
    %15 = arith.addf %11, %14 : vector<8x1xf32>
    %16 = math.rsqrt %15 : vector<8x1xf32>
    %17 = arith.mulf %16, %13 : vector<8x1xf32>
    %18 = vector.broadcast %17 : vector<8x1xf32> to vector<8x256xf32>
    %19 = arith.mulf %6, %18 : vector<8x256xf32>
    %20 = vector.broadcast %12 : vector<8x1xf32> to vector<8x256xf32>
    %21 = arith.addf %19, %20 : vector<8x256xf32>
    %c0_8 = arith.constant 0 : index
    %c0_9 = arith.constant 0 : index
    %22 = vector.load %arg3[%c0_8, %c0_9] : memref<8x256xf32, #tpu.memory_space<vmem>>, vector<8x256xf32>
    tpu.vector_store %arg3[%c0_8, %c0_9], %21 {strides = array<i32>} : memref<8x256xf32, #tpu.memory_space<vmem>>, vector<8x256xf32>,
    return
  }
  func.func @transform_0(%arg0: i32) -> (i32, i32) {
    %c0_i32 = arith.constant 0 : i32
    %c0_i32_0 = arith.constant 0 : i32
    return %arg0, %c0_i32 : i32, i32
  }
  func.func @transform_1(%arg0: i32) -> (i32, i32) {
    %c0_i32 = arith.constant 0 : i32
    %c0_i32_0 = arith.constant 0 : i32
    return %arg0, %c0_i32 : i32, i32
  }
  func.func @transform_2(%arg0: i32) -> (i32, i32) {
    %c0_i32 = arith.constant 0 : i32
    %c0_i32_0 = arith.constant 0 : i32
    return %arg0, %c0_i32 : i32, i32
  }
}

</mosaic_0001>

<llo_original>
// kernel: tpu_custom_call.1
$region0: #{tpu_custom_call.1}
  #allocation0 [shape = 'u32[]', space=smem, size = 0x4, offset = 0x4, fixed_abs, tag = 'smem constant byte address 0x4 - core index']
  #allocation1 [shape = 'u32[144,128]{1,0:T(1,128)}', space=vmem, size = 0x12000, scoped, tag = 'internal scratch']
  %s0 = inlined_call_operand.hbm [shape: f32[8,256], index: 0, kind: input, shape index: {}]
  %s1 = inlined_call_operand.vmem [shape: f32[8,2], index: 1, kind: input, shape index: {}]
  %s2 = inlined_call_operand.hbm [shape: f32[8,256], index: 2, kind: output, shape index: {}]
  %s3 = sld [smem:[#allocation0]]
  $region22: #{tpu_custom_call.1} parent=0
    _
  %s5 = ssub.s32 1, %s3
  %s6 = scalar_select 0, %s5, %s3
  $region1: #{tpu_custom_call.1} parent=0
    #allocation2 [shape = 'u8[8192]{0}', space=vmem, size = 0x2000, scoped, tag = 'input window, operand 0, single buffered']
    #allocation3 [shape = 's32[1]{0}', space=sflag, size = 0x4, scoped, tag = 'scoped memory for tpu_custom_call.1']
    #allocation4 [shape = 's32[1]{0}', space=sflag, size = 0x4, scoped, tag = 'scoped memory for tpu_custom_call.1']
    #allocation5 [shape = 'u8[8192]{0}', space=vmem, size = 0x2000, scoped, tag = 'output window, operand 0, single buffered']
    %7 = vsyncpa [#allocation3], 0
    %8 = vsyncpa [#allocation4], 0
    // Predicated region
    $region2: #{tpu_custom_call.1} parent=1 // pred_check
      _
    $region3: #{tpu_custom_call.1} parent=1 // pred_check_branch
      %10 = sbr.rel (0) target = $region5
    $region4: #{tpu_custom_call.1} parent=1 // pred_region
      %s12 = ssub.s32 256, 256
      %13 = vsyncadd [#allocation3], %s12
      %s15 = sshll.u32 [#allocation2], 4
      %s16 = int_to_ptr.vmem [resolvable:$true] %s15
      %18 = dma.hbm_to_vmem [thread:$0]  %s0, 256, %s16, [#allocation3]
    $region5: #{tpu_custom_call.1} parent=1 // pred_fallthru
      _
    // Predicated region
    $region6: #{tpu_custom_call.1} parent=1 // pred_check
      _
    $region7: #{tpu_custom_call.1} parent=1 // pred_check_branch
      %20 = sbr.rel (0) target = $region9
    $region8: #{tpu_custom_call.1} parent=1 // pred_region
      _
    $region9: #{tpu_custom_call.1} parent=1 // pred_fallthru
      _
    // Predicated region
    $region10: #{tpu_custom_call.1} parent=1 // pred_check
      _
    $region11: #{tpu_custom_call.1} parent=1 // pred_check_branch
      %22 = sbr.rel (0) target = $region13
    $region12: #{tpu_custom_call.1} parent=1 // pred_region
      %23 = dma.done [#allocation3], 256
    $region13: #{tpu_custom_call.1} parent=1 // pred_fallthru
      _
    %v24 = vld [vmem:[#allocation2] sm:$0xff]
    %v25 = vld [vmem:[#allocation2 + $0x8] sm:$0xff]
    %v26 = vadd.f32 %v24, %v25
    %27 = vadd.xlane.f32.xlu0 %v26
    %v28 = vpop.xlane.xlu0 %27
    %v29 = vmul.f32 %v28, 0.00390625
    %v30 = vsub.f32 %v24, %v29
    %v31 = vsub.f32 %v25, %v29
    %v32 = vmul.f32 %v30, %v30
    %v33 = vmul.f32 %v31, %v31
    %v34 = vadd.f32 %v32, %v33
    %35 = vadd.xlane.f32.xlu0 %v34
    %v36 = vpop.xlane.xlu0 %35
    %v37 = vmul.f32 %v36, 0.003921569
    %v38 = vld [vmem:[%s1] sm:$0xff]
    %v39 = vadd.f32 %v37, 1e-05
    %v40 = vrsqrt.pop %v39
    %v41 = vmul.f32 %v40, %v38
    %43 = vset.pattern.permute.xlu0 1
    %44 = vperm.xlu0 %43, %v41
    %v45 = vpop.permute.xlu0 %44
    %v47 = vmul.f32 %v30, %v45
    %v48 = vmul.f32 %v31, %v45
    %50 = vset.pattern.permute.xlu0 0
    %51 = vperm.xlu0 %50, %v38
    %v52 = vpop.permute.xlu0 %51
    %v54 = vadd.f32 %v47, %v52
    %v55 = vadd.f32 %v48, %v52
    %56 = vst [vmem:[#allocation5] sm:$0xff] %v54
    %57 = vst [vmem:[#allocation5 + $0x8] sm:$0xff] %v55
    // Predicated region
    $region14: #{tpu_custom_call.1} parent=1 // pred_check
      _
    $region15: #{tpu_custom_call.1} parent=1 // pred_check_branch
      %59 = sbr.rel (0) target = $region17
    $region16: #{tpu_custom_call.1} parent=1 // pred_region
      %s61 = ssub.s32 256, 256
      %62 = vsyncadd [#allocation4], %s61
      %s64 = sshll.u32 [#allocation5], 4
      %s65 = int_to_ptr.vmem [resolvable:$true] %s64
      %67 = dma.vmem_to_hbm [thread:$0]  %s65, 256, %s2, [#allocation4]
    $region17: #{tpu_custom_call.1} parent=1 // pred_fallthru
      _
    // Predicated region
    $region18: #{tpu_custom_call.1} parent=1 // pred_check
      _
    $region19: #{tpu_custom_call.1} parent=1 // pred_check_branch
      %69 = sbr.rel (0) target = $region21
    $region20: #{tpu_custom_call.1} parent=1 // pred_region
      %70 = dma.done [#allocation4], 256
    $region21: #{tpu_custom_call.1} parent=1 // pred_fallthru
      _
    %71 = vsyncpa [#allocation3], 1
    %72 = vsyncpa [#allocation4], 1

</llo_original>
